<compile_context>
chip_gen: v6e
topology: v6e:2x2x1
jax: 0.10.0
libtpu: 0.0.40
codegen_flags: <defaults>
</compile_context>

<pallas_src>
import functools

import jax
import jax.numpy as jnp
from jax import lax
from jax.experimental import pallas as pl
from jax.experimental.pallas import tpu as pltpu

LANES = 128
SUBLANES = 8
ACC = 4                       # independent accumulator groups (breaks add chain)
ROW_ALIGN = SUBLANES * ACC    # 32 rows -> 4096-element alignment of the flat stream


def _complex_l1_kernel(mag_ref, out_ref, *, rows, tr, bps, full_blocks):
    c = pl.program_id(0)          # TensorCore split ("parallel")
    i = pl.program_id(1)          # reduction step within the split ("arbitrary")
    blk = c * bps + i             # logical (unclamped) block index

    @pl.when(i == 0)
    def _():
        out_ref[...] = jnp.zeros_like(out_ref)

    mag = mag_ref[...]            # (tr, 128) f32 = |input - target|

    def _partial_sum(x):
        # (tr,128) -> (tr//32, ACC, 8, 128); sum over the leading axis gives
        # ACC independent vreg-add chains -> (ACC, 8, 128) resident block.
        return jnp.sum(x.reshape(tr // ROW_ALIGN, ACC, SUBLANES, LANES), axis=0)

    # Hot path: fully valid block -> no mask work (pure VPU adds).
    @pl.when(blk < full_blocks)
    def _():
        out_ref[...] += _partial_sum(mag)[None]

    # Cold path: the single possibly-partial final block and/or the duplicated
    # block from the cdiv-based two-core split; zero rows past the array.
    @pl.when(blk >= full_blocks)
    def _():
        row0 = blk * tr
        row_ids = row0 + lax.broadcasted_iota(jnp.int32, (tr, LANES), 0)
        out_ref[...] += _partial_sum(jnp.where(row_ids < rows, mag, 0.0))[None]


@functools.partial(jax.jit, static_argnames=("tile_rows",))
def complex_l1_loss(inp, tgt, *, tile_rows=8192):
    """mean(|inp - tgt|) for complex arrays of identical shape (ComplexL1Loss)."""
    # TODO(synk): the PyTorch module only warns (and broadcasts) on a size
    # mismatch; here we require matching shapes.
    assert inp.shape == tgt.shape, "input/target shape mismatch"
    assert tile_rows % ROW_ALIGN == 0

    n = int(inp.size)

    # Fused (jitted) prep pass: complex subtraction + modulus -> ONE f32 stream.
    # XLA's complex abs uses hypot-style scaling (no overflow at |d| ~ 1e19).
    mag = jnp.abs(inp - tgt).astype(jnp.float32).reshape(-1)

    # Align to a (32, 128) f32 slab; explicit zero padding contributes 0 to the
    # sum so no in-kernel mask is needed for it (at most 4095 extra elements).
    chunk = ROW_ALIGN * LANES
    padded = pl.cdiv(n, chunk) * chunk
    if padded != n:
        mag = jnp.pad(mag, (0, padded - n))
    rows = padded // LANES                  # multiple of 32
    mag = mag.reshape(rows, LANES)

    # Big lane-dense row tiles; VMEM = 2 buffers x tr x 128 x 4 B (8 MiB @ 8192).
    tr = min(tile_rows, rows)               # both multiples of 32
    n_blocks = pl.cdiv(rows, tr)
    full_blocks = rows // tr                # blocks entirely inside the array

    # Two-way TensorCore split on v7x even for odd block counts (cdiv + clamp);
    # the duplicated block is zeroed by the mask branch. No-op on v5e/v6e.
    num_splits = 2 if n_blocks >= 2 else 1
    bps = pl.cdiv(n_blocks, num_splits)
    last = n_blocks - 1

    kernel = functools.partial(
        _complex_l1_kernel, rows=rows, tr=tr, bps=bps, full_blocks=full_blocks)

    in_spec = pl.BlockSpec(
        (tr, LANES), lambda c, i: (jnp.minimum(c * bps + i, last), 0))
    out_spec = pl.BlockSpec((1, ACC, SUBLANES, LANES), lambda c, i: (c, 0, 0, 0))

    partial_sums = pl.pallas_call(
        kernel,
        out_shape=jax.ShapeDtypeStruct((num_splits, ACC, SUBLANES, LANES),
                                       jnp.float32),
        grid_spec=pltpu.PrefetchScalarGridSpec(
            num_scalar_prefetch=0,
            grid=(num_splits, bps),
            in_specs=[in_spec],
            out_specs=out_spec,
        ),
        compiler_params=pltpu.CompilerParams(
            dimension_semantics=("parallel", "arbitrary"),
        ),
    )(mag)

    # Single cross-lane reduction + mean normalization outside the kernel.
    return jnp.sum(partial_sums) / jnp.float32(n)


def _reference(inp, tgt):
    return jnp.mean(jnp.abs(inp - tgt)).astype(jnp.float32)


def _make_pair(key, shape):
    k1, k2, k3, k4 = jax.random.split(key, 4)
    inp = (jax.random.normal(k1, shape, dtype=jnp.float32)
           + 1j * jax.random.normal(k2, shape, dtype=jnp.float32)).astype(jnp.complex64)
    tgt = (jax.random.normal(k3, shape, dtype=jnp.float32)
           + 1j * jax.random.normal(k4, shape, dtype=jnp.float32)).astype(jnp.complex64)
    return inp, tgt


if __name__ == "__main__":
    key = jax.random.PRNGKey(0)
    keys = jax.random.split(key, 5)

    checks = [
        # (shape, tile_rows):
        ((2, 4, 16, 16), 8192),   # basic, single block
        ((4, 4, 32, 32), 32),     # even 2-way TensorCore split
        ((3, 4, 32, 32), 32),     # odd block count -> cdiv split + duplicated block
        ((5, 4, 32, 32), 64),     # partial final block (masked cold path)
        ((3, 5, 7), 8192),        # element-level zero-padding path
    ]

    for k, (shape, tr) in zip(keys, checks):
        inp, tgt = _make_pair(k, shape)
        got = jax.block_until_ready(complex_l1_loss(inp, tgt, tile_rows=tr))
        want = jax.block_until_ready(_reference(inp, tgt))
        assert jnp.allclose(got, want, rtol=1e-5, atol=1e-5), (shape, tr, got, want)

    print("KERNEL_OK")
</pallas_src>

<mosaic_0001>
module attributes {stable_mosaic.version = 11 : i64} {
  func.func @_complex_l1_kernel(%arg0: i32, %arg1: i32, %arg2: memref<32x128xf32, #tpu.memory_space<vmem>>, %arg3: memref<1x4x8x128xf32, #tpu.memory_space<vmem>>) attributes {dimension_semantics = [#tpu.dimension_semantics<parallel>, #tpu.dimension_semantics<arbitrary>], iteration_bounds = array<i64: 1, 1>, scalar_prefetch = 0 : i64, scratch_operands = 0 : i64, tpu.core_type = #tpu.core_type<tc>, window_params = [{transform_indices = @transform_0, window_bounds = array<i64: 32, 128>}, {transform_indices = @transform_1, window_bounds = array<i64: 1, 4, 8, 128>}]} {
    %c1_i32 = arith.constant 1 : i32
    %0 = arith.muli %arg0, %c1_i32 : i32
    %1 = arith.addi %0, %arg1 : i32
    %c0_i32 = arith.constant 0 : i32
    %2 = arith.cmpi eq, %arg1, %c0_i32 : i32
    %3 = arith.extui %2 : i1 to i32
    %c0_i32_0 = arith.constant 0 : i32
    %4 = arith.cmpi ne, %3, %c0_i32_0 : i32
    scf.if %4 {
      %cst = arith.constant 0.000000e+00 : f32
      %12 = vector.broadcast %cst : f32 to vector<1x4x8x128xf32>
      %c0_6 = arith.constant 0 : index
      %c0_7 = arith.constant 0 : index
      %c0_8 = arith.constant 0 : index
      %c0_9 = arith.constant 0 : index
      %13 = vector.load %arg3[%c0_6, %c0_7, %c0_8, %c0_9] : memref<1x4x8x128xf32, #tpu.memory_space<vmem>>, vector<1x4x8x128xf32>
      tpu.vector_store %arg3[%c0_6, %c0_7, %c0_8, %c0_9], %12 {strides = array<i32>} : memref<1x4x8x128xf32, #tpu.memory_space<vmem>>, vector<1x4x8x128xf32>,
    } else {
    }
    %c0 = arith.constant 0 : index
    %c0_1 = arith.constant 0 : index
    %5 = vector.load %arg2[%c0, %c0_1] : memref<32x128xf32, #tpu.memory_space<vmem>>, vector<32x128xf32>
    %c1_i32_2 = arith.constant 1 : i32
    %6 = arith.cmpi slt, %1, %c1_i32_2 : i32
    %7 = arith.extui %6 : i1 to i32
    %c0_i32_3 = arith.constant 0 : i32
    %8 = arith.cmpi ne, %7, %c0_i32_3 : i32
    scf.if %8 {
      %c0_6 = arith.constant 0 : index
      %c0_7 = arith.constant 0 : index
      %c0_8 = arith.constant 0 : index
      %c0_9 = arith.constant 0 : index
      %12 = vector.load %arg3[%c0_6, %c0_7, %c0_8, %c0_9] : memref<1x4x8x128xf32, #tpu.memory_space<vmem>>, vector<1x4x8x128xf32>
      %13 = vector.shape_cast %5 : vector<32x128xf32> to vector<1x4x8x128xf32>
      %cst = arith.constant dense<0.000000e+00> : vector<4x8x128xf32>
      %14 = vector.multi_reduction <add>, %13, %cst [0] : vector<1x4x8x128xf32> to vector<4x8x128xf32>
      %15 = vector.shape_cast %14 : vector<4x8x128xf32> to vector<1x4x8x128xf32>
      %16 = arith.addf %12, %15 : vector<1x4x8x128xf32>
      %c0_10 = arith.constant 0 : index
      %c0_11 = arith.constant 0 : index
      %c0_12 = arith.constant 0 : index
      %c0_13 = arith.constant 0 : index
      %17 = vector.load %arg3[%c0_10, %c0_11, %c0_12, %c0_13] : memref<1x4x8x128xf32, #tpu.memory_space<vmem>>, vector<1x4x8x128xf32>
      tpu.vector_store %arg3[%c0_10, %c0_11, %c0_12, %c0_13], %16 {strides = array<i32>} : memref<1x4x8x128xf32, #tpu.memory_space<vmem>>, vector<1x4x8x128xf32>,
    } else {
    }
    %c1_i32_4 = arith.constant 1 : i32
    %9 = arith.cmpi sge, %1, %c1_i32_4 : i32
    %10 = arith.extui %9 : i1 to i32
    %c0_i32_5 = arith.constant 0 : i32
    %11 = arith.cmpi ne, %10, %c0_i32_5 : i32
    scf.if %11 {
      %c32_i32 = arith.constant 32 : i32
      %12 = arith.muli %1, %c32_i32 : i32
      %13 = tpu.iota {dimensions = array<i32: 0>} : vector<32x128xi32>
      %14 = vector.broadcast %12 : i32 to vector<32x128xi32>
      %15 = arith.addi %14, %13 : vector<32x128xi32>
      %c0_6 = arith.constant 0 : index
      %c0_7 = arith.constant 0 : index
      %c0_8 = arith.constant 0 : index
      %c0_9 = arith.constant 0 : index
      %16 = vector.load %arg3[%c0_6, %c0_7, %c0_8, %c0_9] : memref<1x4x8x128xf32, #tpu.memory_space<vmem>>, vector<1x4x8x128xf32>
      %c32_i32_10 = arith.constant 32 : i32
      %17 = vector.broadcast %c32_i32_10 : i32 to vector<32x128xi32>
      %18 = arith.cmpi slt, %15, %17 : vector<32x128xi32>
      %cst = arith.constant 0.000000e+00 : f32
      %19 = vector.broadcast %cst : f32 to vector<32x128xf32>
      %20 = arith.select %18, %5, %19 : vector<32x128xi1>, vector<32x128xf32>
      %21 = vector.shape_cast %20 : vector<32x128xf32> to vector<1x4x8x128xf32>
      %cst_11 = arith.constant dense<0.000000e+00> : vector<4x8x128xf32>
      %22 = vector.multi_reduction <add>, %21, %cst_11 [0] : vector<1x4x8x128xf32> to vector<4x8x128xf32>
      %23 = vector.shape_cast %22 : vector<4x8x128xf32> to vector<1x4x8x128xf32>
      %24 = arith.addf %16, %23 : vector<1x4x8x128xf32>
      %c0_12 = arith.constant 0 : index
      %c0_13 = arith.constant 0 : index
      %c0_14 = arith.constant 0 : index
      %c0_15 = arith.constant 0 : index
      %25 = vector.load %arg3[%c0_12, %c0_13, %c0_14, %c0_15] : memref<1x4x8x128xf32, #tpu.memory_space<vmem>>, vector<1x4x8x128xf32>
      tpu.vector_store %arg3[%c0_12, %c0_13, %c0_14, %c0_15], %24 {strides = array<i32>} : memref<1x4x8x128xf32, #tpu.memory_space<vmem>>, vector<1x4x8x128xf32>,
    } else {
    }
    return
  }
  func.func @transform_0(%arg0: i32, %arg1: i32) -> (i32, i32) {
    %c1_i32 = arith.constant 1 : i32
    %0 = arith.muli %arg0, %c1_i32 : i32
    %1 = arith.addi %0, %arg1 : i32
    %c0_i32 = arith.constant 0 : i32
    %2 = arith.minsi %1, %c0_i32 : i32
    %c0_i32_0 = arith.constant 0 : i32
    %c0_i32_1 = arith.constant 0 : i32
    return %2, %c0_i32_0 : i32, i32
  }
  func.func @transform_1(%arg0: i32, %arg1: i32) -> (i32, i32, i32, i32) {
    %c0_i32 = arith.constant 0 : i32
    %c0_i32_0 = arith.constant 0 : i32
    %c0_i32_1 = arith.constant 0 : i32
    %c0_i32_2 = arith.constant 0 : i32
    return %arg0, %c0_i32, %c0_i32_0, %c0_i32_1 : i32, i32, i32, i32
  }
}

</mosaic_0001>

<llo_original>
// kernel: custom-call.1
$region0: #{custom-call.1}
  %s0 = inlined_call_operand.hbm [shape: c64[2,4,16,16], index: 0, kind: input, shape index: {}]
  %s1 = inlined_call_operand.vmem [shape: f32[2,4,16,16], index: 1, kind: output, shape index: {}]
  %s2 = scalar_lea.hbm %s0, 2048
  $region1: #{custom-call.1} parent=0
    #allocation0 [shape = 's32[1]{0}', space=sflag, size = 0x4, scoped, tag = 'scoped memory for custom-call.1']
    %3 = vsyncpa [#allocation0], 0
    %s4 = sshll.u32 %s1, 4
    %s5 = int_to_ptr.vmem [resolvable:$true] %s4
    %7 = dma.hbm_to_vmem [thread:$0]  %s2, 2048, %s5, [#allocation0]
    %8 = dma.done [#allocation0], 2048
    %9 = vsyncpa [#allocation0], 1

// kernel: custom-call
$region0: #{custom-call}
  %s0 = inlined_call_operand.hbm [shape: c64[2,4,16,16], index: 0, kind: input, shape index: {}]
  %s1 = inlined_call_operand.vmem [shape: f32[2,4,16,16], index: 1, kind: output, shape index: {}]
  $region1: #{custom-call} parent=0
    #allocation0 [shape = 's32[1]{0}', space=sflag, size = 0x4, scoped, tag = 'scoped memory for custom-call']
    %2 = vsyncpa [#allocation0], 0
    %s3 = sshll.u32 %s1, 4
    %s4 = int_to_ptr.vmem [resolvable:$true] %s3
    %6 = dma.hbm_to_vmem [thread:$0]  %s0, 2048, %s4, [#allocation0]
    %7 = dma.done [#allocation0], 2048
    %8 = vsyncpa [#allocation0], 1

// kernel: complex_l1_loss.1
$region0: #{complex_l1_loss.1}
  #allocation0 [shape = 'u32[]', space=smem, size = 0x4, offset = 0x4, fixed_abs, tag = 'smem constant byte address 0x4 - core index']
  #allocation1 [shape = 'u32[144,128]{1,0:T(1,128)}', space=vmem, size = 0x12000, scoped, tag = 'internal scratch']
  %s0 = inlined_call_operand.vmem [shape: f32[32,128], index: 0, kind: input, shape index: {}]
  %s1 = inlined_call_operand.vmem [shape: f32[1,4,8,128], index: 1, kind: output, shape index: {}]
  %s2 = sld [smem:[#allocation0]]
  $region26: #{complex_l1_loss.1} parent=0
    _
  %s4 = ssub.s32 1, %s2
  %s5 = scalar_select 0, %s4, %s2
  // Predicated region
  $region2: #{complex_l1_loss.1} parent=0 // pred_check
    _
  $region3: #{complex_l1_loss.1} parent=0 // pred_check_branch
    %7 = sbr.rel (0) target = $region5
  $region4: #{complex_l1_loss.1} parent=0 // pred_region
    %s8 = sadd.s32 0, 0
    %p9 = scmp.lt.s32.totalorder %s8, 0
    %s10 = scalar_select %p9, %s8, 0
    %s11 = smul.u32 4, %s10
    %p12 = scmp.lt.s32.totalorder %s11, 3
    %s13 = scalar_select %p12, %s11, 3
    %s14 = smul.addr %s13, 8
    %s15 = scalar_lea.vmem %s0, %s14
    %s16 = sadd.s32 0, 0
    %p17 = scmp.lt.s32.totalorder %s16, 0
    %s18 = scalar_select %p17, %s16, 0
    %s19 = smul.u32 4, %s18
  $region5: #{complex_l1_loss.1} parent=0 // pred_fallthru
    _
  %s20 = sadd.s32 0, 0
  %p21 = scmp.lt.s32.totalorder %s20, 0
  %s22 = scalar_select %p21, %s20, 0
  %s23 = smul.u32 4, %s22
  %p24 = scmp.lt.s32.totalorder %s23, 3
  %s25 = scalar_select %p24, %s23, 3
  %s26 = smul.addr %s25, 8
  %s27 = scalar_lea.vmem %s0, %s26
  %s28 = sadd.s32 0, 0
  %p29 = scmp.lt.s32.totalorder %s28, 0
  %s30 = scalar_select %p29, %s28, 0
  %s31 = smul.u32 4, %s30
  %p32 = scmp.lt.s32.totalorder %s31, 3
  %s33 = scalar_select %p32, %s31, 3
  %s34 = smul.addr %s33, 8
  %s35 = scalar_lea.vmem %s0, %s34
  %s36 = sadd.s32 0, 0
  %p37 = scmp.lt.s32.totalorder %s36, 0
  %s38 = scalar_select %p37, %s36, 0
  %s39 = smul.u32 4, %s38
  %s40 = sadd.s32 0, 0
  %p41 = scmp.eq.s32.totalorder 0, 0
  // Predicated region
  $region6: #{complex_l1_loss.1} parent=0 // pred_check
    %p42 = pneg %p41
  $region7: #{complex_l1_loss.1} parent=0 // pred_check_branch
    %44 = sbr.rel (%p42) target = $region9
  $region8: #{complex_l1_loss.1} parent=0 // pred_region
    %45 = vst [vmem:[%s1] sm:$0xff] 0.0
    %46 = vst [vmem:[%s1 + $0x8] sm:$0xff] 0.0
    %47 = vst [vmem:[%s1 + $0x10] sm:$0xff] 0.0
    %48 = vst [vmem:[%s1 + $0x18] sm:$0xff] 0.0
  $region9: #{complex_l1_loss.1} parent=0 // pred_fallthru
    _
  %v49 = vld [vmem:[%s35] sm:$0xff]
  %v50 = vld [vmem:[%s35 + $0x8] sm:$0xff]
  %v51 = vld [vmem:[%s35 + $0x10] sm:$0xff]
  %v52 = vld [vmem:[%s35 + $0x18] sm:$0xff]
  %p53 = scmp.lt.s32.totalorder %s40, 1
  // Predicated region
  $region10: #{complex_l1_loss.1} parent=0 // pred_check
    %p54 = pneg %p53
  $region11: #{complex_l1_loss.1} parent=0 // pred_check_branch
    %56 = sbr.rel (%p54) target = $region13
  $region12: #{complex_l1_loss.1} parent=0 // pred_region
    %v57 = vld [vmem:[%s1] sm:$0xff]
    %v58 = vld [vmem:[%s1 + $0x8] sm:$0xff]
    %v59 = vld [vmem:[%s1 + $0x10] sm:$0xff]
    %v60 = vld [vmem:[%s1 + $0x18] sm:$0xff]
    %v61 = vadd.f32 %v49, 0.0
    %v62 = vadd.f32 %v50, 0.0
    %v63 = vadd.f32 %v51, 0.0
    %v64 = vadd.f32 %v52, 0.0
    %v65 = vadd.f32 %v57, %v61
    %v66 = vadd.f32 %v58, %v62
    %v67 = vadd.f32 %v59, %v63
    %v68 = vadd.f32 %v60, %v64
    %69 = vst [vmem:[%s1] sm:$0xff] %v65
    %70 = vst [vmem:[%s1 + $0x8] sm:$0xff] %v66
    %71 = vst [vmem:[%s1 + $0x10] sm:$0xff] %v67
    %72 = vst [vmem:[%s1 + $0x18] sm:$0xff] %v68
  $region13: #{complex_l1_loss.1} parent=0 // pred_fallthru
    _
  %p73 = scmp.ge.s32.totalorder %s40, 1
  // Predicated region
  $region14: #{complex_l1_loss.1} parent=0 // pred_check
    %p74 = pneg %p73
  $region15: #{complex_l1_loss.1} parent=0 // pred_check_branch
    %76 = sbr.rel (%p74) target = $region17
  $region16: #{complex_l1_loss.1} parent=0 // pred_region
    %s77 = smul.u32 %s40, 32
    %v78 = vlaneseq
    %v79 = vshrl.u32 %v78, 7
    %v80 = vadd.s32 %v79, 8
    %v81 = vadd.s32 %v79, 16
    %v82 = vadd.s32 %v79, 24
    %v83 = vstv %s77
    %v84 = vadd.s32 %v83, %v79
    %v85 = vadd.s32 %v83, %v80
    %v86 = vadd.s32 %v83, %v81
    %v87 = vadd.s32 %v83, %v82
    %v88 = vld [vmem:[%s1] sm:$0xff]
    %v89 = vld [vmem:[%s1 + $0x8] sm:$0xff]
    %v90 = vld [vmem:[%s1 + $0x10] sm:$0xff]
    %v91 = vld [vmem:[%s1 + $0x18] sm:$0xff]
    %vm92 = vcmp.lt.s32.totalorder %v84, 32
    %vm93 = vcmp.lt.s32.totalorder %v85, 32
    %vm94 = vcmp.lt.s32.totalorder %v86, 32
    %vm95 = vcmp.lt.s32.totalorder %v87, 32
    %v96 = vsel %vm92, %v49, 0.0
    %v97 = vsel %vm93, %v50, 0.0
    %v98 = vsel %vm94, %v51, 0.0
    %v99 = vsel %vm95, %v52, 0.0
    %v100 = vadd.f32 %v96, 0.0
    %v101 = vadd.f32 %v97, 0.0
    %v102 = vadd.f32 %v98, 0.0
    %v103 = vadd.f32 %v99, 0.0
    %v104 = vadd.f32 %v88, %v100
    %v105 = vadd.f32 %v89, %v101
    %v106 = vadd.f32 %v90, %v102
    %v107 = vadd.f32 %v91, %v103
    %108 = vst [vmem:[%s1] sm:$0xff] %v104
    %109 = vst [vmem:[%s1 + $0x8] sm:$0xff] %v105
    %110 = vst [vmem:[%s1 + $0x10] sm:$0xff] %v106
    %111 = vst [vmem:[%s1 + $0x18] sm:$0xff] %v107
  $region17: #{complex_l1_loss.1} parent=0 // pred_fallthru
    _
  // Predicated region
  $region18: #{complex_l1_loss.1} parent=0 // pred_check
    _
  $region19: #{complex_l1_loss.1} parent=0 // pred_check_branch
    %113 = sbr.rel (0) target = $region21
  $region20: #{complex_l1_loss.1} parent=0 // pred_region
    _
  $region21: #{complex_l1_loss.1} parent=0 // pred_fallthru
    _
  // Predicated region
  $region22: #{complex_l1_loss.1} parent=0 // pred_check
    _
  $region23: #{complex_l1_loss.1} parent=0 // pred_check_branch
    %115 = sbr.rel (0) target = $region25
  $region24: #{complex_l1_loss.1} parent=0 // pred_region
    _
  $region25: #{complex_l1_loss.1} parent=0 // pred_fallthru
    _

</llo_original>
